<compile_context>
chip_gen: v6e
topology: v6e:2x2x1
jax: 0.10.0
libtpu: 0.0.40
codegen_flags: <defaults>
</compile_context>

<pallas_src>
import functools
import math

import jax
import jax.numpy as jnp
from jax import lax
from jax.experimental import pallas as pl
from jax.experimental.pallas import tpu as pltpu

LANE = 128             # vreg lane width
SUBLANE = 8            # f32 sublane count
ALIGN = SUBLANE * LANE  # 1024: only pad to this granularity (at most)
TM_MAX = 8192          # rows per grid step: 8192*128*4B = 4 MiB per f32 operand block
PAD_X = 1.0e4          # neutral pad logit: bce == 0 exactly (safe for f16/bf16/f32)
PAD_T = 1.0            # neutral pad target


def _int_pow(q, gamma):
    """q ** gamma as a VPU multiply chain when gamma is a small integer."""
    g = float(gamma)
    if g == int(g) and 0 <= int(g) <= 8:
        gi = int(g)
        if gi == 0:
            return jnp.ones_like(q)
        r = q
        for _ in range(gi - 1):
            r = r * q
        return r
    # Non-integer gamma fallback: guard the log(0) path when pt == 1 (q == 0).
    return jnp.where(q > 0.0, jnp.exp(g * jnp.log(jnp.maximum(q, 1e-38))), 0.0)


def _tensorcores_per_chip():
    """1 on single-TC chips (v5e/v6e, and per-device on v2/v3); 2 on v4/v5p/v7x."""
    try:
        kind = jax.devices()[0].device_kind.lower()
    except Exception:
        return 1
    if any(tag in kind for tag in ("lite", "v5e", "v6e", "v2", "v3")):
        return 1
    return 2


def _focal_kernel(x_ref, t_ref, out_ref, *, alpha, gamma, tm, rc, valid_rows,
                  blocks_per_core):
    p = pl.program_id(0)
    j = pl.program_id(1)
    b = p * blocks_per_core + j            # unclamped global row-block index

    @pl.when(j == 0)
    def _():
        out_ref[...] = jnp.zeros_like(out_ref)

    n_chunks = tm // rc                    # static

    def accumulate(masked):
        def body(c, acc):
            r0 = pl.multiple_of(c * rc, rc)
            x = x_ref[pl.ds(r0, rc), :].astype(jnp.float32)
            t = t_ref[pl.ds(r0, rc), :].astype(jnp.float32)   # in-register cast
            # Numerically stable BCE-with-logits (matches torch):
            #   bce = max(x, 0) - x*t + log1p(exp(-|x|))
            bce = jnp.maximum(x, 0.0) - x * t + jnp.log1p(jnp.exp(-jnp.abs(x)))
            pt = jnp.exp(-bce)
            fl = _int_pow(1.0 - pt, gamma) * bce
            if alpha != 1.0:
                fl = alpha * fl
            if masked:
                # Only the ragged last block (and any clamped duplicate) runs this:
                # rows past `valid_rows` hold OOB/garbage data -> select 0.
                row = (b * tm + r0) + lax.broadcasted_iota(jnp.int32, (rc, LANE), 0)
                fl = jnp.where(row < valid_rows, fl, 0.0)
            # (rc,128) -> (8,128): cross-vreg VPU adds; lane reduce deferred to host.
            return acc + fl.reshape(-1, SUBLANE, LANE).sum(axis=0)

        return lax.fori_loop(0, n_chunks, body,
                             jnp.zeros((SUBLANE, LANE), jnp.float32))

    needs_mask = (b + 1) * tm > valid_rows

    @pl.when(jnp.logical_not(needs_mask))
    def _():
        out_ref[...] += accumulate(False)[None]

    @pl.when(needs_mask)
    def _():
        out_ref[...] += accumulate(True)[None]


@functools.partial(jax.jit, static_argnames=("alpha", "gamma"))
def focal_loss(inputs, targets, alpha=1.0, gamma=3.0):
    """Pallas implementation of FocalLoss(alpha, gamma, logits=True, reduce=True)."""
    assert inputs.shape == targets.shape
    n = math.prod(inputs.shape) if inputs.shape else 1
    pad = (-n) % ALIGN                     # at most 1023 elements
    rows = (n + pad) // LANE               # multiple of 8

    def prep(a, pad_val):
        flat = a.reshape(-1)               # free for contiguous arrays
        if pad:                            # copy only in this (non-1024-aligned) case
            fill = jnp.full((pad,), pad_val, dtype=flat.dtype)
            flat = jnp.concatenate([flat, fill])
        return flat.reshape(rows, LANE)

    x2 = prep(inputs, PAD_X)
    t2 = prep(targets, PAD_T)              # caller's dtype; cast in-kernel

    tm = min(TM_MAX, rows)                 # rows per grid step (multiple of 8)
    n_blocks = pl.cdiv(rows, tm)
    n_cores = min(_tensorcores_per_chip(), n_blocks)
    bpc = pl.cdiv(n_blocks, n_cores)       # row blocks per core

    rc = tm                                # in-kernel chunk rows (divides tm)
    for cand in (256, 128, 64, 32, 16, 8):
        if tm % cand == 0:
            rc = cand
            break

    # Clamp duplicate (out-of-range) block indices to the last real block; the DMA
    # is skipped (same block index) and the kernel zero-masks the duplicate.
    in_idx = lambda p, j: (jnp.minimum(p * bpc + j, n_blocks - 1), 0)

    kernel = functools.partial(
        _focal_kernel, alpha=float(alpha), gamma=float(gamma),
        tm=tm, rc=rc, valid_rows=rows, blocks_per_core=bpc)

    block_bytes = tm * LANE * (x2.dtype.itemsize + t2.dtype.itemsize)
    vmem_limit = min(48 << 20, max(32 << 20, 2 * block_bytes + (8 << 20)))

    partials = pl.pallas_call(
        kernel,
        out_shape=jax.ShapeDtypeStruct((n_cores, SUBLANE, LANE), jnp.float32),
        grid_spec=pltpu.PrefetchScalarGridSpec(
            num_scalar_prefetch=0,
            grid=(n_cores, bpc),
            in_specs=[
                pl.BlockSpec((tm, LANE), in_idx),
                pl.BlockSpec((tm, LANE), in_idx),
            ],
            out_specs=pl.BlockSpec((1, SUBLANE, LANE), lambda p, j: (p, 0, 0)),
        ),
        compiler_params=pltpu.CompilerParams(
            dimension_semantics=("parallel", "arbitrary"),
            vmem_limit_bytes=vmem_limit,
        ),
    )(x2, t2)

    # Tiny epilogue outside the kernel: cross-lane/core reduction + mean.
    return jnp.sum(partials) / jnp.float32(n)


def focal_loss_ref(inputs, targets, alpha=1.0, gamma=3.0):
    x = inputs.astype(jnp.float32)
    t = targets.astype(jnp.float32)
    bce = jnp.maximum(x, 0.0) - x * t + jnp.log1p(jnp.exp(-jnp.abs(x)))
    pt = jnp.exp(-bce)
    return jnp.mean(alpha * (1.0 - pt) ** gamma * bce)


if __name__ == "__main__":
    key = jax.random.PRNGKey(0)

    # Primary case: NCHW logits + binary targets (segmentation-style head).
    k1, k2 = jax.random.split(key)
    x = jax.random.normal(k1, (2, 4, 16, 16), dtype=jnp.float32)
    t = (jax.random.uniform(k2, (2, 4, 16, 16)) > 0.5).astype(jnp.float32)
    out = jax.block_until_ready(focal_loss(x, t, alpha=1.0, gamma=3.0))
    ref = focal_loss_ref(x, t, alpha=1.0, gamma=3.0)
    assert jnp.allclose(out, ref, rtol=1e-5, atol=1e-6), (out, ref)

    # Soft targets in [0,1]: semantics match torch BCE-with-logits (no binary assumption).
    t_soft = jax.random.uniform(k2, (2, 4, 16, 16), dtype=jnp.float32)
    out_s = jax.block_until_ready(focal_loss(x, t_soft))
    ref_s = focal_loss_ref(x, t_soft)
    assert jnp.allclose(out_s, ref_s, rtol=1e-5, atol=1e-6), (out_s, ref_s)

    # Odd size: exercises the minimal (1 KiB-granularity) neutral-padding path.
    k3, k4 = jax.random.split(k1)
    x_odd = jax.random.normal(k3, (3, 5, 33, 17), dtype=jnp.float32)
    t_odd = (jax.random.uniform(k4, (3, 5, 33, 17)) > 0.5).astype(jnp.float32)
    out_odd = jax.block_until_ready(focal_loss(x_odd, t_odd))
    ref_odd = focal_loss_ref(x_odd, t_odd)
    assert jnp.allclose(out_odd, ref_odd, rtol=1e-4, atol=1e-6), (out_odd, ref_odd)

    # Larger case: multiple row blocks -> exercises the 2-axis grid, the ragged last
    # block's in-kernel row mask, and (on 2-TC chips) the parallel core axis.
    k5, k6 = jax.random.split(k2)
    x_big = jax.random.normal(k5, (6, 9, 128, 160), dtype=jnp.float32)
    t_big = (jax.random.uniform(k6, (6, 9, 128, 160)) > 0.5).astype(jnp.float32)
    out_big = jax.block_until_ready(focal_loss(x_big, t_big))
    ref_big = focal_loss_ref(x_big, t_big)
    assert jnp.allclose(out_big, ref_big, rtol=1e-4, atol=1e-6), (out_big, ref_big)

    print("KERNEL_OK")
</pallas_src>

<mosaic_0001>
module attributes {stable_mosaic.version = 11 : i64} {
  func.func @_focal_kernel(%arg0: i32, %arg1: i32, %arg2: memref<16x128xf32, #tpu.memory_space<vmem>>, %arg3: memref<16x128xf32, #tpu.memory_space<vmem>>, %arg4: memref<1x8x128xf32, #tpu.memory_space<vmem>>) attributes {dimension_semantics = [#tpu.dimension_semantics<parallel>, #tpu.dimension_semantics<arbitrary>], iteration_bounds = array<i64: 1, 1>, scalar_prefetch = 0 : i64, scratch_operands = 0 : i64, tpu.core_type = #tpu.core_type<tc>, window_params = [{transform_indices = @transform_0, window_bounds = array<i64: 16, 128>}, {transform_indices = @transform_1, window_bounds = array<i64: 16, 128>}, {transform_indices = @transform_2, window_bounds = array<i64: 1, 8, 128>}]} {
    %c1_i32 = arith.constant 1 : i32
    %0 = arith.muli %arg0, %c1_i32 : i32
    %1 = arith.addi %0, %arg1 : i32
    %c0_i32 = arith.constant 0 : i32
    %2 = arith.cmpi eq, %arg1, %c0_i32 : i32
    %3 = arith.extui %2 : i1 to i32
    %c0_i32_0 = arith.constant 0 : i32
    %4 = arith.cmpi ne, %3, %c0_i32_0 : i32
    scf.if %4 {
      %cst = arith.constant 0.000000e+00 : f32
      %13 = vector.broadcast %cst : f32 to vector<1x8x128xf32>
      %c0 = arith.constant 0 : index
      %c0_5 = arith.constant 0 : index
      %c0_6 = arith.constant 0 : index
      %14 = vector.load %arg4[%c0, %c0_5, %c0_6] : memref<1x8x128xf32, #tpu.memory_space<vmem>>, vector<1x8x128xf32>
      tpu.vector_store %arg4[%c0, %c0_5, %c0_6], %13 {strides = array<i32>} : memref<1x8x128xf32, #tpu.memory_space<vmem>>, vector<1x8x128xf32>,
    } else {
    }
    %c1_i32_1 = arith.constant 1 : i32
    %5 = arith.addi %1, %c1_i32_1 : i32
    %c16_i32 = arith.constant 16 : i32
    %6 = arith.muli %5, %c16_i32 : i32
    %c16_i32_2 = arith.constant 16 : i32
    %7 = arith.cmpi sgt, %6, %c16_i32_2 : i32
    %true = arith.constant true
    %8 = arith.xori %7, %true : i1
    %9 = arith.extui %8 : i1 to i32
    %c0_i32_3 = arith.constant 0 : i32
    %10 = arith.cmpi ne, %9, %c0_i32_3 : i32
    scf.if %10 {
      %c0 = arith.constant 0 : index
      %c0_5 = arith.constant 0 : index
      %c0_6 = arith.constant 0 : index
      %13 = vector.load %arg4[%c0, %c0_5, %c0_6] : memref<1x8x128xf32, #tpu.memory_space<vmem>>, vector<1x8x128xf32>
      %cst = arith.constant 0.000000e+00 : f32
      %14 = vector.broadcast %cst : f32 to vector<8x128xf32>
      %c0_i32_7 = arith.constant 0 : i32
      %c16_i32_8 = arith.constant 16 : i32
      %15 = arith.muli %c0_i32_7, %c16_i32_8 : i32
      %16 = tpu.assume_multiple %15, 16 : i32
      %17 = arith.index_cast %16 : i32 to index
      %c0_9 = arith.constant 0 : index
      %18 = vector.load %arg2[%17, %c0_9] : memref<16x128xf32, #tpu.memory_space<vmem>>, vector<16x128xf32>
      %19 = arith.index_cast %16 : i32 to index
      %c0_10 = arith.constant 0 : index
      %20 = vector.load %arg3[%19, %c0_10] : memref<16x128xf32, #tpu.memory_space<vmem>>, vector<16x128xf32>
      %cst_11 = arith.constant 0.000000e+00 : f32
      %21 = vector.broadcast %cst_11 : f32 to vector<16x128xf32>
      %22 = arith.maximumf %18, %21 : vector<16x128xf32>
      %23 = arith.mulf %18, %20 : vector<16x128xf32>
      %24 = arith.subf %22, %23 : vector<16x128xf32>
      %25 = math.absf %18 : vector<16x128xf32>
      %cst_12 = arith.constant 0.000000e+00 : f32
      %26 = vector.broadcast %cst_12 : f32 to vector<16x128xf32>
      %27 = arith.subf %26, %25 : vector<16x128xf32>
      %28 = math.exp %27 : vector<16x128xf32>
      %29 = math.log1p %28 : vector<16x128xf32>
      %30 = arith.addf %24, %29 : vector<16x128xf32>
      %cst_13 = arith.constant 0.000000e+00 : f32
      %31 = vector.broadcast %cst_13 : f32 to vector<16x128xf32>
      %32 = arith.subf %31, %30 : vector<16x128xf32>
      %33 = math.exp %32 : vector<16x128xf32>
      %cst_14 = arith.constant 1.000000e+00 : f32
      %34 = vector.broadcast %cst_14 : f32 to vector<16x128xf32>
      %35 = arith.subf %34, %33 : vector<16x128xf32>
      %36 = arith.mulf %35, %35 : vector<16x128xf32>
      %37 = arith.mulf %36, %35 : vector<16x128xf32>
      %38 = arith.mulf %37, %30 : vector<16x128xf32>
      %39 = vector.shape_cast %38 : vector<16x128xf32> to vector<2x8x128xf32>
      %cst_15 = arith.constant dense<0.000000e+00> : vector<8x128xf32>
      %40 = vector.multi_reduction <add>, %39, %cst_15 [0] : vector<2x8x128xf32> to vector<8x128xf32>
      %41 = arith.addf %14, %40 : vector<8x128xf32>
      %c1_i32_16 = arith.constant 1 : i32
      %42 = vector.shape_cast %41 : vector<8x128xf32> to vector<1x8x128xf32>
      %43 = arith.addf %13, %42 : vector<1x8x128xf32>
      %c0_17 = arith.constant 0 : index
      %c0_18 = arith.constant 0 : index
      %c0_19 = arith.constant 0 : index
      %44 = vector.load %arg4[%c0_17, %c0_18, %c0_19] : memref<1x8x128xf32, #tpu.memory_space<vmem>>, vector<1x8x128xf32>
      tpu.vector_store %arg4[%c0_17, %c0_18, %c0_19], %43 {strides = array<i32>} : memref<1x8x128xf32, #tpu.memory_space<vmem>>, vector<1x8x128xf32>,
    } else {
    }
    %11 = arith.extui %7 : i1 to i32
    %c0_i32_4 = arith.constant 0 : i32
    %12 = arith.cmpi ne, %11, %c0_i32_4 : i32
    scf.if %12 {
      %c0 = arith.constant 0 : index
      %c0_5 = arith.constant 0 : index
      %c0_6 = arith.constant 0 : index
      %13 = vector.load %arg4[%c0, %c0_5, %c0_6] : memref<1x8x128xf32, #tpu.memory_space<vmem>>, vector<1x8x128xf32>
      %cst = arith.constant 0.000000e+00 : f32
      %14 = vector.broadcast %cst : f32 to vector<8x128xf32>
      %c0_i32_7 = arith.constant 0 : i32
      %c16_i32_8 = arith.constant 16 : i32
      %15 = arith.muli %c0_i32_7, %c16_i32_8 : i32
      %16 = tpu.assume_multiple %15, 16 : i32
      %17 = arith.index_cast %16 : i32 to index
      %c0_9 = arith.constant 0 : index
      %18 = vector.load %arg2[%17, %c0_9] : memref<16x128xf32, #tpu.memory_space<vmem>>, vector<16x128xf32>
      %19 = arith.index_cast %16 : i32 to index
      %c0_10 = arith.constant 0 : index
      %20 = vector.load %arg3[%19, %c0_10] : memref<16x128xf32, #tpu.memory_space<vmem>>, vector<16x128xf32>
      %cst_11 = arith.constant 0.000000e+00 : f32
      %21 = vector.broadcast %cst_11 : f32 to vector<16x128xf32>
      %22 = arith.maximumf %18, %21 : vector<16x128xf32>
      %23 = arith.mulf %18, %20 : vector<16x128xf32>
      %24 = arith.subf %22, %23 : vector<16x128xf32>
      %25 = math.absf %18 : vector<16x128xf32>
      %cst_12 = arith.constant 0.000000e+00 : f32
      %26 = vector.broadcast %cst_12 : f32 to vector<16x128xf32>
      %27 = arith.subf %26, %25 : vector<16x128xf32>
      %28 = math.exp %27 : vector<16x128xf32>
      %29 = math.log1p %28 : vector<16x128xf32>
      %30 = arith.addf %24, %29 : vector<16x128xf32>
      %cst_13 = arith.constant 0.000000e+00 : f32
      %31 = vector.broadcast %cst_13 : f32 to vector<16x128xf32>
      %32 = arith.subf %31, %30 : vector<16x128xf32>
      %33 = math.exp %32 : vector<16x128xf32>
      %cst_14 = arith.constant 1.000000e+00 : f32
      %34 = vector.broadcast %cst_14 : f32 to vector<16x128xf32>
      %35 = arith.subf %34, %33 : vector<16x128xf32>
      %36 = arith.mulf %35, %35 : vector<16x128xf32>
      %37 = arith.mulf %36, %35 : vector<16x128xf32>
      %38 = arith.mulf %37, %30 : vector<16x128xf32>
      %c16_i32_15 = arith.constant 16 : i32
      %39 = arith.muli %1, %c16_i32_15 : i32
      %40 = arith.addi %39, %16 : i32
      %41 = tpu.iota {dimensions = array<i32: 0>} : vector<16x128xi32>
      %42 = vector.broadcast %40 : i32 to vector<16x128xi32>
      %43 = arith.addi %42, %41 : vector<16x128xi32>
      %c16_i32_16 = arith.constant 16 : i32
      %44 = vector.broadcast %c16_i32_16 : i32 to vector<16x128xi32>
      %45 = arith.cmpi slt, %43, %44 : vector<16x128xi32>
      %cst_17 = arith.constant 0.000000e+00 : f32
      %46 = vector.broadcast %cst_17 : f32 to vector<16x128xf32>
      %47 = arith.select %45, %38, %46 : vector<16x128xi1>, vector<16x128xf32>
      %48 = vector.shape_cast %47 : vector<16x128xf32> to vector<2x8x128xf32>
      %cst_18 = arith.constant dense<0.000000e+00> : vector<8x128xf32>
      %49 = vector.multi_reduction <add>, %48, %cst_18 [0] : vector<2x8x128xf32> to vector<8x128xf32>
      %50 = arith.addf %14, %49 : vector<8x128xf32>
      %c1_i32_19 = arith.constant 1 : i32
      %51 = vector.shape_cast %50 : vector<8x128xf32> to vector<1x8x128xf32>
      %52 = arith.addf %13, %51 : vector<1x8x128xf32>
      %c0_20 = arith.constant 0 : index
      %c0_21 = arith.constant 0 : index
      %c0_22 = arith.constant 0 : index
      %53 = vector.load %arg4[%c0_20, %c0_21, %c0_22] : memref<1x8x128xf32, #tpu.memory_space<vmem>>, vector<1x8x128xf32>
      tpu.vector_store %arg4[%c0_20, %c0_21, %c0_22], %52 {strides = array<i32>} : memref<1x8x128xf32, #tpu.memory_space<vmem>>, vector<1x8x128xf32>,
    } else {
    }
    return
  }
  func.func @transform_0(%arg0: i32, %arg1: i32) -> (i32, i32) {
    %c1_i32 = arith.constant 1 : i32
    %0 = arith.muli %arg0, %c1_i32 : i32
    %1 = arith.addi %0, %arg1 : i32
    %c0_i32 = arith.constant 0 : i32
    %2 = arith.minsi %1, %c0_i32 : i32
    %c0_i32_0 = arith.constant 0 : i32
    %c0_i32_1 = arith.constant 0 : i32
    return %2, %c0_i32_0 : i32, i32
  }
  func.func @transform_1(%arg0: i32, %arg1: i32) -> (i32, i32) {
    %c1_i32 = arith.constant 1 : i32
    %0 = arith.muli %arg0, %c1_i32 : i32
    %1 = arith.addi %0, %arg1 : i32
    %c0_i32 = arith.constant 0 : i32
    %2 = arith.minsi %1, %c0_i32 : i32
    %c0_i32_0 = arith.constant 0 : i32
    %c0_i32_1 = arith.constant 0 : i32
    return %2, %c0_i32_0 : i32, i32
  }
  func.func @transform_2(%arg0: i32, %arg1: i32) -> (i32, i32, i32) {
    %c0_i32 = arith.constant 0 : i32
    %c0_i32_0 = arith.constant 0 : i32
    %c0_i32_1 = arith.constant 0 : i32
    return %arg0, %c0_i32, %c0_i32_0 : i32, i32, i32
  }
}

</mosaic_0001>

<llo_original>
// kernel: focal_loss.1
$region0: #{focal_loss.1}
  #allocation0 [shape = 'u32[]', space=smem, size = 0x4, offset = 0x4, fixed_abs, tag = 'smem constant byte address 0x4 - core index']
  #allocation1 [shape = 'u32[144,128]{1,0:T(1,128)}', space=vmem, size = 0x12000, scoped, tag = 'internal scratch']
  %s0 = inlined_call_operand.vmem [shape: f32[16,128], index: 0, kind: input, shape index: {}]
  %s1 = inlined_call_operand.vmem [shape: f32[16,128], index: 1, kind: input, shape index: {}]
  %s2 = inlined_call_operand.vmem [shape: f32[1,8,128], index: 2, kind: output, shape index: {}]
  %s3 = sld [smem:[#allocation0]]
  $region30: #{focal_loss.1} parent=0
    _
  %s5 = ssub.s32 1, %s3
  %s6 = scalar_select 0, %s5, %s3
  // Predicated region
  $region2: #{focal_loss.1} parent=0 // pred_check
    _
  $region3: #{focal_loss.1} parent=0 // pred_check_branch
    %8 = sbr.rel (0) target = $region5
  $region4: #{focal_loss.1} parent=0 // pred_region
    %s9 = sadd.s32 0, 0
    %p10 = scmp.lt.s32.totalorder %s9, 0
    %s11 = scalar_select %p10, %s9, 0
    %s12 = smul.u32 2, %s11
    %p13 = scmp.lt.s32.totalorder %s12, 1
    %s14 = scalar_select %p13, %s12, 1
    %s15 = smul.addr %s14, 8
    %s16 = scalar_lea.vmem %s0, %s15
    %s17 = sadd.s32 0, 0
    %p18 = scmp.lt.s32.totalorder %s17, 0
    %s19 = scalar_select %p18, %s17, 0
    %s20 = smul.u32 2, %s19
  $region5: #{focal_loss.1} parent=0 // pred_fallthru
    _
  // Predicated region
  $region6: #{focal_loss.1} parent=0 // pred_check
    _
  $region7: #{focal_loss.1} parent=0 // pred_check_branch
    %22 = sbr.rel (0) target = $region9
  $region8: #{focal_loss.1} parent=0 // pred_region
    %s23 = sadd.s32 0, 0
    %p24 = scmp.lt.s32.totalorder %s23, 0
    %s25 = scalar_select %p24, %s23, 0
    %s26 = smul.u32 2, %s25
    %p27 = scmp.lt.s32.totalorder %s26, 1
    %s28 = scalar_select %p27, %s26, 1
    %s29 = smul.addr %s28, 8
    %s30 = scalar_lea.vmem %s1, %s29
    %s31 = sadd.s32 0, 0
    %p32 = scmp.lt.s32.totalorder %s31, 0
    %s33 = scalar_select %p32, %s31, 0
    %s34 = smul.u32 2, %s33
  $region9: #{focal_loss.1} parent=0 // pred_fallthru
    _
  %s35 = sadd.s32 0, 0
  %p36 = scmp.lt.s32.totalorder %s35, 0
  %s37 = scalar_select %p36, %s35, 0
  %s38 = smul.u32 2, %s37
  %p39 = scmp.lt.s32.totalorder %s38, 1
  %s40 = scalar_select %p39, %s38, 1
  %s41 = smul.addr %s40, 8
  %s42 = scalar_lea.vmem %s0, %s41
  %s43 = sadd.s32 0, 0
  %p44 = scmp.lt.s32.totalorder %s43, 0
  %s45 = scalar_select %p44, %s43, 0
  %s46 = smul.u32 2, %s45
  %p47 = scmp.lt.s32.totalorder %s46, 1
  %s48 = scalar_select %p47, %s46, 1
  %s49 = smul.addr %s48, 8
  %s50 = scalar_lea.vmem %s1, %s49
  %s51 = sadd.s32 0, 0
  %p52 = scmp.lt.s32.totalorder %s51, 0
  %s53 = scalar_select %p52, %s51, 0
  %s54 = smul.u32 2, %s53
  %p55 = scmp.lt.s32.totalorder %s54, 1
  %s56 = scalar_select %p55, %s54, 1
  %s57 = smul.addr %s56, 8
  %s58 = scalar_lea.vmem %s0, %s57
  %s59 = sadd.s32 0, 0
  %p60 = scmp.lt.s32.totalorder %s59, 0
  %s61 = scalar_select %p60, %s59, 0
  %s62 = smul.u32 2, %s61
  %s63 = sadd.s32 0, 0
  %p64 = scmp.lt.s32.totalorder %s63, 0
  %s65 = scalar_select %p64, %s63, 0
  %s66 = smul.u32 2, %s65
  %p67 = scmp.lt.s32.totalorder %s66, 1
  %s68 = scalar_select %p67, %s66, 1
  %s69 = smul.addr %s68, 8
  %s70 = scalar_lea.vmem %s1, %s69
  %s71 = sadd.s32 0, 0
  %p72 = scmp.lt.s32.totalorder %s71, 0
  %s73 = scalar_select %p72, %s71, 0
  %s74 = smul.u32 2, %s73
  %s75 = sadd.s32 0, 0
  %p76 = scmp.eq.s32.totalorder 0, 0
  // Predicated region
  $region10: #{focal_loss.1} parent=0 // pred_check
    %p77 = pneg %p76
  $region11: #{focal_loss.1} parent=0 // pred_check_branch
    %79 = sbr.rel (%p77) target = $region13
  $region12: #{focal_loss.1} parent=0 // pred_region
    %80 = vst [vmem:[%s2] sm:$0xff] 0.0
  $region13: #{focal_loss.1} parent=0 // pred_fallthru
    _
  %s81 = sadd.s32 %s75, 1
  %s82 = smul.u32 %s81, 16
  %p83 = scmp.gt.s32.totalorder %s82, 16
  %p84 = scmp.le.s32.totalorder %s82, 16
  // Predicated region
  $region14: #{focal_loss.1} parent=0 // pred_check
    %p85 = pneg %p84
  $region15: #{focal_loss.1} parent=0 // pred_check_branch
    %87 = sbr.rel (%p85) target = $region17
  $region16: #{focal_loss.1} parent=0 // pred_region
    %v88 = vld [vmem:[%s2] sm:$0xff]
    %v89 = vld [vmem:[%s58] sm:$0xff]
    %v90 = vld [vmem:[%s58 + $0x8] sm:$0xff]
    %v91 = vld [vmem:[%s70] sm:$0xff]
    %v92 = vld [vmem:[%s70 + $0x8] sm:$0xff]
    %v93 = vmax.f32 %v89, 0.0
    %v94 = vmax.f32 %v90, 0.0
    %v95 = vmul.f32 %v89, %v91
    %v96 = vmul.f32 %v90, %v92
    %v97 = vsub.f32 %v93, %v95
    %v98 = vsub.f32 %v94, %v96
    %v99 = vand.u32 2147483647, %v89
    %v100 = vand.u32 2147483647, %v90
    %v101 = vsub.f32 0.0, %v99
    %v102 = vsub.f32 0.0, %v100
    %v103 = vmul.f32 %v101, 1.442695
    %v104 = vpow.pop %v103
    %v105 = vmul.f32 %v102, 1.442695
    %v106 = vpow.pop %v105
    %v107 = vadd.f32 %v104, 1.0
    %v108 = vlog2.pop %v107
    %v109 = vmul.f32 %v108, 0.6931472
    %v110 = vmul.f32 -0.5, %v104
    %v111 = vadd.f32 %v110, 1.0
    %v112 = vmul.f32 %v111, %v104
    %v113 = vand.u32 2147483647, %v104
    %vm114 = vcmp.lt.f32.partialorder %v113, 0.0004427343
    %v115 = vsel %vm114, %v112, %v109
    %v116 = vadd.f32 %v106, 1.0
    %v117 = vlog2.pop %v116
    %v118 = vmul.f32 %v117, 0.6931472
    %v119 = vmul.f32 -0.5, %v106
    %v120 = vadd.f32 %v119, 1.0
    %v121 = vmul.f32 %v120, %v106
    %v122 = vand.u32 2147483647, %v106
    %vm123 = vcmp.lt.f32.partialorder %v122, 0.0004427343
    %v124 = vsel %vm123, %v121, %v118
    %v125 = vadd.f32 %v97, %v115
    %v126 = vadd.f32 %v98, %v124
    %v127 = vsub.f32 0.0, %v125
    %v128 = vsub.f32 0.0, %v126
    %v129 = vmul.f32 %v127, 1.442695
    %v130 = vpow.pop %v129
    %v131 = vmul.f32 %v128, 1.442695
    %v132 = vpow.pop %v131
    %v133 = vsub.f32 1.0, %v130
    %v134 = vsub.f32 1.0, %v132
    %v135 = vmul.f32 %v133, %v133
    %v136 = vmul.f32 %v134, %v134
    %v137 = vmul.f32 %v135, %v133
    %v138 = vmul.f32 %v136, %v134
    %v139 = vmul.f32 %v137, %v125
    %v140 = vmul.f32 %v138, %v126
    %v141 = vadd.f32 %v139, %v140
    %v142 = vadd.f32 %v141, 0.0
    %v143 = vadd.f32 %v88, %v142
    %144 = vst [vmem:[%s2] sm:$0xff] %v143
  $region17: #{focal_loss.1} parent=0 // pred_fallthru
    _
  // Predicated region
  $region18: #{focal_loss.1} parent=0 // pred_check
    %p145 = pneg %p83
  $region19: #{focal_loss.1} parent=0 // pred_check_branch
    %147 = sbr.rel (%p145) target = $region21
  $region20: #{focal_loss.1} parent=0 // pred_region
    %v148 = vld [vmem:[%s2] sm:$0xff]
    %v149 = vld [vmem:[%s58] sm:$0xff]
    %v150 = vld [vmem:[%s58 + $0x8] sm:$0xff]
    %v151 = vld [vmem:[%s70] sm:$0xff]
    %v152 = vld [vmem:[%s70 + $0x8] sm:$0xff]
    %v153 = vmax.f32 %v149, 0.0
    %v154 = vmax.f32 %v150, 0.0
    %v155 = vmul.f32 %v149, %v151
    %v156 = vmul.f32 %v150, %v152
    %v157 = vsub.f32 %v153, %v155
    %v158 = vsub.f32 %v154, %v156
    %v159 = vand.u32 2147483647, %v149
    %v160 = vand.u32 2147483647, %v150
    %v161 = vsub.f32 0.0, %v159
    %v162 = vsub.f32 0.0, %v160
    %v163 = vmul.f32 %v161, 1.442695
    %v164 = vpow.pop %v163
    %v165 = vmul.f32 %v162, 1.442695
    %v166 = vpow.pop %v165
    %v167 = vadd.f32 %v164, 1.0
    %v168 = vlog2.pop %v167
    %v169 = vmul.f32 %v168, 0.6931472
    %v170 = vmul.f32 -0.5, %v164
    %v171 = vadd.f32 %v170, 1.0
    %v172 = vmul.f32 %v171, %v164
    %v173 = vand.u32 2147483647, %v164
    %vm174 = vcmp.lt.f32.partialorder %v173, 0.0004427343
    %v175 = vsel %vm174, %v172, %v169
    %v176 = vadd.f32 %v166, 1.0
    %v177 = vlog2.pop %v176
    %v178 = vmul.f32 %v177, 0.6931472
    %v179 = vmul.f32 -0.5, %v166
    %v180 = vadd.f32 %v179, 1.0
    %v181 = vmul.f32 %v180, %v166
    %v182 = vand.u32 2147483647, %v166
    %vm183 = vcmp.lt.f32.partialorder %v182, 0.0004427343
    %v184 = vsel %vm183, %v181, %v178
    %v185 = vadd.f32 %v157, %v175
    %v186 = vadd.f32 %v158, %v184
    %v187 = vsub.f32 0.0, %v185
    %v188 = vsub.f32 0.0, %v186
    %v189 = vmul.f32 %v187, 1.442695
    %v190 = vpow.pop %v189
    %v191 = vmul.f32 %v188, 1.442695
    %v192 = vpow.pop %v191
    %v193 = vsub.f32 1.0, %v190
    %v194 = vsub.f32 1.0, %v192
    %v195 = vmul.f32 %v193, %v193
    %v196 = vmul.f32 %v194, %v194
    %v197 = vmul.f32 %v195, %v193
    %v198 = vmul.f32 %v196, %v194
    %v199 = vmul.f32 %v197, %v185
    %v200 = vmul.f32 %v198, %v186
    %s201 = smul.u32 %s75, 16
    %s202 = sadd.s32 %s201, 0
    %v203 = vlaneseq
    %v204 = vshrl.u32 %v203, 7
    %v205 = vadd.s32 %v204, 8
    %v206 = vstv %s202
    %v207 = vadd.s32 %v206, %v204
    %v208 = vadd.s32 %v206, %v205
    %vm209 = vcmp.lt.s32.totalorder %v207, 16
    %vm210 = vcmp.lt.s32.totalorder %v208, 16
    %v211 = vsel %vm209, %v199, 0.0
    %v212 = vsel %vm210, %v200, 0.0
    %v213 = vadd.f32 %v211, %v212
    %v214 = vadd.f32 %v213, 0.0
    %v215 = vadd.f32 %v148, %v214
    %216 = vst [vmem:[%s2] sm:$0xff] %v215
  $region21: #{focal_loss.1} parent=0 // pred_fallthru
    _
  // Predicated region
  $region22: #{focal_loss.1} parent=0 // pred_check
    _
  $region23: #{focal_loss.1} parent=0 // pred_check_branch
    %218 = sbr.rel (0) target = $region25
  $region24: #{focal_loss.1} parent=0 // pred_region
    _
  $region25: #{focal_loss.1} parent=0 // pred_fallthru
    _
  // Predicated region
  $region26: #{focal_loss.1} parent=0 // pred_check
    _
  $region27: #{focal_loss.1} parent=0 // pred_check_branch
    %220 = sbr.rel (0) target = $region29
  $region28: #{focal_loss.1} parent=0 // pred_region
    _
  $region29: #{focal_loss.1} parent=0 // pred_fallthru
    _

</llo_original>
